<compile_context>
chip_gen: v5e
topology: v5e:2x2
jax: 0.10.0
libtpu: 0.0.40
codegen_flags: <defaults>
</compile_context>

<pallas_src>
import functools

import numpy as np
import jax
import jax.numpy as jnp
from jax import lax
from jax.experimental import pallas as pl
from jax.experimental.pallas import tpu as pltpu


# ---------------------------------------------------------------------------
# Pallas kernel: per (image, row-tile) fused branch0 (quarter-res matmul +
# in-kernel 2x2 nearest upsample), branch1 (1x1 conv matmul), bias/ReLU,
# exact f32 residual.
# ---------------------------------------------------------------------------
def _pang_kernel(add_residual,
                 p_ref,    # (1, Rh, Wh, 9*cin) bf16   quarter-res conv taps
                 x_ref,    # (1, TH, W, cin)    f32    input tile (NHWC)
                 w0_ref,   # (9*cin, cout)      bf16   branch0 weight (BN folded)
                 b0_ref,   # (1, cout)          f32    branch0 bias  (BN folded)
                 w1_ref,   # (cin, cout)        bf16   branch1 weight (BN folded)
                 b1_ref,   # (1, cout)          f32    branch1 bias  (BN folded)
                 out_ref): # (1, TH, W, cout)   f32
    _, TH, W, cin = x_ref.shape
    _, Rh, Wh, K = p_ref.shape
    cout = out_ref.shape[3]

    # branch0: 3x3 dilated stride-2 conv (+BN) + bias + ReLU at quarter
    # resolution -- the stride-2 conv only has H/2 x W/2 distinct outputs; the
    # 2x nearest upsample is reconstructed below.
    p = p_ref[0].reshape(Rh * Wh, K)
    b0 = jnp.dot(p, w0_ref[...], preferred_element_type=jnp.float32) + b0_ref[...]
    b0 = jnp.maximum(b0, 0.0)                                   # (Rh*Wh, cout) f32

    # Nearest 2x upsample along columns: duplicate each half-res column.  Done
    # on the small quarter-res tensor so the padded (2, cout) intermediate
    # stays cheap.
    b0 = jnp.broadcast_to(b0.reshape(Rh * Wh, 1, cout),
                          (Rh * Wh, 2, cout)).reshape(Rh * W, cout)

    # branch1: 1x1 conv (+BN) + bias + ReLU at full resolution.  The x tile
    # stays f32 (exact residual); cast to bf16 only for the MXU operand.
    xf = x_ref[0].reshape(TH * W, cin)
    y1 = jnp.dot(xf.astype(jnp.bfloat16), w1_ref[...],
                 preferred_element_type=jnp.float32) + b1_ref[...]
    y1 = jnp.maximum(y1, 0.0)                                   # (TH*W, cout) f32

    # Nearest 2x upsample along rows, fused into the add via a leading-dim
    # broadcast (no materialized full-resolution branch0 tensor).
    out = y1.reshape(Rh, 2, W, cout) + b0.reshape(Rh, 1, W, cout)
    if add_residual:                     # static: cin == cout
        out = out + xf.reshape(Rh, 2, W, cin)
    out_ref[0] = out.reshape(TH, W, cout).astype(out_ref.dtype)


# ---------------------------------------------------------------------------
# Glue: BN folding, quarter-res tap gather, VMEM-aware tile sizing, wrapper.
# ---------------------------------------------------------------------------
def _fold_bn(w, b, gamma, beta, mean, var, eps=1e-5):
    """Fold eval-mode BatchNorm into conv weight (cout,cin,kh,kw) + bias (cout,)."""
    scale = gamma / jnp.sqrt(var + eps)
    return w * scale[:, None, None, None], (b - mean) * scale + beta


def _round_up(v, m):
    return (v + m - 1) // m * m


def _vmem_capacity_bytes():
    """Physical per-core VMEM (v5e/v6e: 128 MiB, v7x: 64 MiB), with a safe fallback."""
    try:
        cap = int(getattr(pltpu.get_tpu_info(), "vmem_capacity_bytes", 0))
        if cap >= 32 * 1024 * 1024:
            return cap
    except Exception:
        pass
    return 64 * 1024 * 1024   # conservative: v7x per-TensorCore VMEM


def _tile_vmem_bytes(th, W, cin, cout):
    """Estimate VMEM for one grid step at row-tile `th` (even).

    Counts the double-buffered pipeline blocks (with Mosaic's (sublane, lane)
    padding of the minor two dims) AND the in-kernel f32 temporaries that the
    previous version under-counted.
    """
    rh, wh = th // 2, W // 2
    K = 9 * cin
    ci_l = _round_up(cin, 128)
    co_l = _round_up(cout, 128)
    # Double-buffered input/output blocks.
    p_blk = rh * _round_up(wh, 16) * _round_up(K, 128) * 2      # bf16
    x_blk = th * _round_up(W, 8) * ci_l * 4                     # f32
    o_blk = th * _round_up(W, 8) * co_l * 4                     # f32
    blocks = 2 * (p_blk + x_blk + o_blk)
    # In-kernel temporaries (single-buffered values).
    temps = (rh * wh * co_l * 4            # b0 quarter-res
             + rh * wh * 2 * co_l * 4 * 4  # column-dup intermediate, (2,cout) padded
             + rh * W * co_l * 4           # column-duplicated b0
             + th * W * co_l * 4           # y1
             + th * W * co_l * 4           # fused-add result
             + th * W * ci_l * 2)          # bf16 cast of x for the MXU
    return int(1.15 * (blocks + temps))    # fudge for compiler scratch


def _pick_tile_rows(N, H, W, cin, cout, capacity):
    """Largest even row-tile TH dividing H that fits the VMEM budget.

    Prefers tiles giving >= 4 grid steps so both v7x TensorCores get work
    (megacore sharding of the "parallel" grid axes).
    """
    budget = int(capacity * 0.6)
    cands = sorted([th for th in range(2, H + 1, 2) if H % th == 0], reverse=True)
    for want_parallel in (True, False):
        for th in cands:
            if want_parallel and N * (H // th) < 4:
                continue
            if _tile_vmem_bytes(th, W, cin, cout) <= budget:
                return th
    return 2


def pang_unit_stride(x_nchw, params, dilation, bn=True):
    w0, b0 = params["conv0_w"], params["conv0_b"]
    w1, b1 = params["conv1_w"], params["conv1_b"]
    if bn:
        w0, b0 = _fold_bn(w0, b0, params["bn0_gamma"], params["bn0_beta"],
                          params["bn0_mean"], params["bn0_var"])
        w1, b1 = _fold_bn(w1, b1, params["bn1_gamma"], params["bn1_beta"],
                          params["bn1_mean"], params["bn1_var"])

    cout, cin = int(w0.shape[0]), int(w0.shape[1])
    d = int(dilation)

    # NCHW -> NHWC for the kernel's channel-minor blocks.  x stays f32 (exact
    # residual, no separate cast pass); the bf16 cast happens in-kernel.
    # TODO(synk): channels-first lane-dense blocks would remove this relayout.
    x = jnp.transpose(x_nchw, (0, 2, 3, 1)).astype(jnp.float32)
    N, H, W, _ = x.shape
    assert H % 2 == 0 and W % 2 == 0, "stride-2 conv + 2x upsample needs even H, W"
    Hh, Wh = H // 2, W // 2

    # Quarter-resolution conv taps: the stride-2 conv only has H/2 x W/2
    # distinct outputs; the kernel reconstructs the 2x2 nearest upsample.
    xb = x.astype(jnp.bfloat16)
    xp = jnp.pad(xb, ((0, 0), (d, d), (d, d), (0, 0)))
    taps = []
    for kh in range(3):
        for kw in range(3):
            taps.append(xp[:, kh * d: kh * d + H: 2, kw * d: kw * d + W: 2, :])
    patches = jnp.concatenate(taps, axis=-1)               # (N, H/2, W/2, 9*cin)
    K = 9 * cin

    # (cout,cin,3,3) -> (9*cin, cout); row index = (kh*3+kw)*cin + ci.
    w0_flat = jnp.transpose(w0, (2, 3, 1, 0)).reshape(K, cout).astype(jnp.bfloat16)
    w1_flat = jnp.transpose(w1[:, :, 0, 0], (1, 0)).astype(jnp.bfloat16)
    b0_row = b0.reshape(1, cout).astype(jnp.float32)
    b1_row = b1.reshape(1, cout).astype(jnp.float32)

    capacity = _vmem_capacity_bytes()
    TH = _pick_tile_rows(N, H, W, cin, cout, capacity)
    Rh = TH // 2
    T = H // TH
    vmem_limit = min(int(capacity * 0.8), 100 * 1024 * 1024)

    kernel = functools.partial(_pang_kernel, cin == cout)

    flops = (2 * N * Hh * Wh * K * cout        # branch0 quarter-res matmul
             + 2 * N * H * W * cin * cout      # branch1 1x1 matmul
             + 5 * N * H * W * cout)           # bias/relu/upsample-add/residual
    bytes_accessed = (N * Hh * Wh * K * 2      # patches (bf16)
                      + N * H * W * cin * 4    # x (f32)
                      + N * H * W * cout * 4   # out (f32)
                      + (K + cin) * cout * 2 + 2 * cout * 4)

    out_nhwc = pl.pallas_call(
        kernel,
        out_shape=jax.ShapeDtypeStruct((N, H, W, cout), jnp.float32),
        grid=(N, T),
        in_specs=[
            pl.BlockSpec((1, Rh, Wh, K), lambda n, t: (n, t, 0, 0)),
            pl.BlockSpec((1, TH, W, cin), lambda n, t: (n, t, 0, 0)),
            pl.BlockSpec((K, cout), lambda n, t: (0, 0)),
            pl.BlockSpec((1, cout), lambda n, t: (0, 0)),
            pl.BlockSpec((cin, cout), lambda n, t: (0, 0)),
            pl.BlockSpec((1, cout), lambda n, t: (0, 0)),
        ],
        out_specs=pl.BlockSpec((1, TH, W, cout), lambda n, t: (n, t, 0, 0)),
        compiler_params=pltpu.CompilerParams(
            dimension_semantics=("parallel", "parallel"),
            vmem_limit_bytes=vmem_limit),
        cost_estimate=pl.CostEstimate(flops=int(flops), transcendentals=0,
                                      bytes_accessed=int(bytes_accessed)),
    )(patches, x, w0_flat, b0_row, w1_flat, b1_row)

    # TODO(synk): emitting channels-first blocks from the kernel would delete
    # this full-HBM relayout and the masked stores when cout << 128.
    return jnp.transpose(out_nhwc, (0, 3, 1, 2))            # NHWC -> NCHW


# ---------------------------------------------------------------------------
# Pure-JAX reference for verification (optionally mirrors the bf16 operand
# rounding of the kernel; the residual path is exact f32 in both).
# ---------------------------------------------------------------------------
def pang_unit_stride_reference(x_nchw, params, dilation, bn=True, match_bf16=True):
    w0, b0 = params["conv0_w"], params["conv0_b"]
    w1, b1 = params["conv1_w"], params["conv1_b"]
    if bn:
        w0, b0 = _fold_bn(w0, b0, params["bn0_gamma"], params["bn0_beta"],
                          params["bn0_mean"], params["bn0_var"])
        w1, b1 = _fold_bn(w1, b1, params["bn1_gamma"], params["bn1_beta"],
                          params["bn1_mean"], params["bn1_var"])
    cout, cin = int(w0.shape[0]), int(w0.shape[1])
    d = int(dilation)

    x = jnp.transpose(x_nchw, (0, 2, 3, 1)).astype(jnp.float32)
    xc = x
    if match_bf16:
        xc = x.astype(jnp.bfloat16).astype(jnp.float32)
        w0 = w0.astype(jnp.bfloat16).astype(jnp.float32)
        w1 = w1.astype(jnp.bfloat16).astype(jnp.float32)

    w0_hwio = jnp.transpose(w0, (2, 3, 1, 0))
    br0 = lax.conv_general_dilated(
        xc, w0_hwio, window_strides=(2, 2), padding=[(d, d), (d, d)],
        rhs_dilation=(d, d), dimension_numbers=("NHWC", "HWIO", "NHWC"),
        preferred_element_type=jnp.float32, precision=lax.Precision.HIGHEST)
    br0 = jnp.maximum(br0 + b0, 0.0)
    br0 = jnp.repeat(jnp.repeat(br0, 2, axis=1), 2, axis=2)   # nearest x2

    w1_mat = jnp.transpose(w1[:, :, 0, 0], (1, 0))
    br1 = jnp.maximum(jnp.einsum("nhwi,io->nhwo", xc, w1_mat,
                                 preferred_element_type=jnp.float32,
                                 precision=lax.Precision.HIGHEST) + b1, 0.0)

    out = br1 + br0
    if cin == cout:
        out = out + x            # exact f32 residual (matches the kernel)
    return jnp.transpose(out, (0, 3, 1, 2))


if __name__ == "__main__":
    N, cin, cout, H, W, dilation = 2, 4, 4, 16, 16, 1

    key = jax.random.PRNGKey(0)
    ks = jax.random.split(key, 13)
    params = {
        "conv0_w": 0.2 * jax.random.normal(ks[0], (cout, cin, 3, 3), jnp.float32),
        "conv0_b": 0.1 * jax.random.normal(ks[1], (cout,), jnp.float32),
        "bn0_gamma": 1.0 + 0.1 * jax.random.normal(ks[2], (cout,), jnp.float32),
        "bn0_beta": 0.1 * jax.random.normal(ks[3], (cout,), jnp.float32),
        "bn0_mean": 0.1 * jax.random.normal(ks[4], (cout,), jnp.float32),
        "bn0_var": jnp.abs(1.0 + 0.1 * jax.random.normal(ks[5], (cout,), jnp.float32)),
        "conv1_w": 0.2 * jax.random.normal(ks[6], (cout, cin, 1, 1), jnp.float32),
        "conv1_b": 0.1 * jax.random.normal(ks[7], (cout,), jnp.float32),
        "bn1_gamma": 1.0 + 0.1 * jax.random.normal(ks[8], (cout,), jnp.float32),
        "bn1_beta": 0.1 * jax.random.normal(ks[9], (cout,), jnp.float32),
        "bn1_mean": 0.1 * jax.random.normal(ks[10], (cout,), jnp.float32),
        "bn1_var": jnp.abs(1.0 + 0.1 * jax.random.normal(ks[11], (cout,), jnp.float32)),
    }
    x = jax.random.normal(ks[12], (N, cin, H, W), jnp.float32)

    out = pang_unit_stride(x, params, dilation, bn=True)
    out = jax.block_until_ready(out)

    ref = pang_unit_stride_reference(x, params, dilation, bn=True, match_bf16=True)
    np.testing.assert_allclose(np.asarray(out), np.asarray(ref), rtol=2e-3, atol=2e-3)

    print("KERNEL_OK")
</pallas_src>

<mosaic_0001>
module attributes {stable_mosaic.version = 11 : i64} {
  func.func @_pang_kernel(%arg0: i32, %arg1: i32, %arg2: memref<1x4x8x36xbf16, #tpu.memory_space<vmem>>, %arg3: memref<1x8x16x4xf32, #tpu.memory_space<vmem>>, %arg4: memref<36x4xbf16, #tpu.memory_space<vmem>>, %arg5: memref<1x4xf32, #tpu.memory_space<vmem>>, %arg6: memref<4x4xbf16, #tpu.memory_space<vmem>>, %arg7: memref<1x4xf32, #tpu.memory_space<vmem>>, %arg8: memref<1x8x16x4xf32, #tpu.memory_space<vmem>>) attributes {dimension_semantics = [#tpu.dimension_semantics<parallel>, #tpu.dimension_semantics<parallel>], iteration_bounds = array<i64: 2, 2>, scalar_prefetch = 0 : i64, scratch_operands = 0 : i64, tpu.core_type = #tpu.core_type<tc>, window_params = [{transform_indices = @transform_0, window_bounds = array<i64: 1, 4, 8, 36>}, {transform_indices = @transform_1, window_bounds = array<i64: 1, 8, 16, 4>}, {pipeline_mode = #tpu.pipeline_mode<synchronous>, transform_indices = @transform_2, window_bounds = array<i64: 36, 4>}, {pipeline_mode = #tpu.pipeline_mode<synchronous>, transform_indices = @transform_3, window_bounds = array<i64: 1, 4>}, {pipeline_mode = #tpu.pipeline_mode<synchronous>, transform_indices = @transform_4, window_bounds = array<i64: 4, 4>}, {pipeline_mode = #tpu.pipeline_mode<synchronous>, transform_indices = @transform_5, window_bounds = array<i64: 1, 4>}, {transform_indices = @transform_6, window_bounds = array<i64: 1, 8, 16, 4>}]} {
    %c0 = arith.constant 0 : index
    %c0_0 = arith.constant 0 : index
    %c0_1 = arith.constant 0 : index
    %c0_2 = arith.constant 0 : index
    %0 = vector.load %arg2[%c0, %c0_0, %c0_1, %c0_2] : memref<1x4x8x36xbf16, #tpu.memory_space<vmem>>, vector<1x4x8x36xbf16>
    %1 = vector.shape_cast %0 : vector<1x4x8x36xbf16> to vector<4x8x36xbf16>
    %2 = vector.shape_cast %1 : vector<4x8x36xbf16> to vector<32x36xbf16>
    %c0_3 = arith.constant 0 : index
    %c0_4 = arith.constant 0 : index
    %3 = vector.load %arg4[%c0_3, %c0_4] : memref<36x4xbf16, #tpu.memory_space<vmem>>, vector<36x4xbf16>
    %cst = arith.constant dense<0.000000e+00> : vector<32x4xf32>
    %4 = tpu.matmul %2, %3, %cst {dimension_numbers = #tpu.dot_dimension_numbers<[1], [0], [0], [1], [0, 0, 1, 1], [], []>} : vector<32x36xbf16>, vector<36x4xbf16>, vector<32x4xf32> -> vector<32x4xf32>
    %c0_5 = arith.constant 0 : index
    %c0_6 = arith.constant 0 : index
    %5 = vector.load %arg5[%c0_5, %c0_6] : memref<1x4xf32, #tpu.memory_space<vmem>>, vector<1x4xf32>
    %6 = vector.broadcast %5 : vector<1x4xf32> to vector<32x4xf32>
    %7 = arith.addf %4, %6 : vector<32x4xf32>
    %cst_7 = arith.constant 0.000000e+00 : f32
    %8 = vector.broadcast %cst_7 : f32 to vector<32x4xf32>
    %9 = arith.maximumf %7, %8 : vector<32x4xf32>
    %10 = vector.shape_cast %9 : vector<32x4xf32> to vector<32x1x4xf32>
    %11 = vector.shape_cast %10 : vector<32x1x4xf32> to vector<32x1x4xf32>
    %12 = vector.broadcast %11 : vector<32x1x4xf32> to vector<32x2x4xf32>
    %13 = vector.shape_cast %12 : vector<32x2x4xf32> to vector<64x4xf32>
    %c0_8 = arith.constant 0 : index
    %c0_9 = arith.constant 0 : index
    %c0_10 = arith.constant 0 : index
    %c0_11 = arith.constant 0 : index
    %14 = vector.load %arg3[%c0_8, %c0_9, %c0_10, %c0_11] : memref<1x8x16x4xf32, #tpu.memory_space<vmem>>, vector<1x8x16x4xf32>
    %15 = vector.shape_cast %14 : vector<1x8x16x4xf32> to vector<8x16x4xf32>
    %16 = vector.shape_cast %15 : vector<8x16x4xf32> to vector<128x4xf32>
    %17 = arith.truncf %16 : vector<128x4xf32> to vector<128x4xbf16>
    %c0_12 = arith.constant 0 : index
    %c0_13 = arith.constant 0 : index
    %18 = vector.load %arg6[%c0_12, %c0_13] : memref<4x4xbf16, #tpu.memory_space<vmem>>, vector<4x4xbf16>
    %cst_14 = arith.constant dense<0.000000e+00> : vector<128x4xf32>
    %19 = tpu.matmul %17, %18, %cst_14 {dimension_numbers = #tpu.dot_dimension_numbers<[1], [0], [0], [1], [0, 0, 1, 1], [], []>} : vector<128x4xbf16>, vector<4x4xbf16>, vector<128x4xf32> -> vector<128x4xf32>
    %c0_15 = arith.constant 0 : index
    %c0_16 = arith.constant 0 : index
    %20 = vector.load %arg7[%c0_15, %c0_16] : memref<1x4xf32, #tpu.memory_space<vmem>>, vector<1x4xf32>
    %21 = vector.broadcast %20 : vector<1x4xf32> to vector<128x4xf32>
    %22 = arith.addf %19, %21 : vector<128x4xf32>
    %cst_17 = arith.constant 0.000000e+00 : f32
    %23 = vector.broadcast %cst_17 : f32 to vector<128x4xf32>
    %24 = arith.maximumf %22, %23 : vector<128x4xf32>
    %25 = vector.shape_cast %24 : vector<128x4xf32> to vector<4x2x16x4xf32>
    %26 = vector.shape_cast %13 : vector<64x4xf32> to vector<4x1x16x4xf32>
    %27 = vector.broadcast %26 : vector<4x1x16x4xf32> to vector<4x2x16x4xf32>
    %28 = arith.addf %25, %27 : vector<4x2x16x4xf32>
    %29 = vector.shape_cast %16 : vector<128x4xf32> to vector<4x2x16x4xf32>
    %30 = arith.addf %28, %29 : vector<4x2x16x4xf32>
    %31 = vector.shape_cast %30 : vector<4x2x16x4xf32> to vector<8x16x4xf32>
    %c0_18 = arith.constant 0 : index
    %c0_19 = arith.constant 0 : index
    %c0_20 = arith.constant 0 : index
    %c0_21 = arith.constant 0 : index
    %32 = vector.load %arg8[%c0_18, %c0_19, %c0_20, %c0_21] : memref<1x8x16x4xf32, #tpu.memory_space<vmem>>, vector<1x8x16x4xf32>
    %33 = vector.shape_cast %32 : vector<1x8x16x4xf32> to vector<8x16x4xf32>
    %34 = vector.shape_cast %31 : vector<8x16x4xf32> to vector<1x8x16x4xf32>
    tpu.vector_store %arg8[%c0_18, %c0_19, %c0_20, %c0_21], %34 {strides = array<i32>} : memref<1x8x16x4xf32, #tpu.memory_space<vmem>>, vector<1x8x16x4xf32>,
    return
  }
  func.func @transform_0(%arg0: i32, %arg1: i32) -> (i32, i32, i32, i32) {
    %c0_i32 = arith.constant 0 : i32
    %c0_i32_0 = arith.constant 0 : i32
    %c0_i32_1 = arith.constant 0 : i32
    return %arg0, %arg1, %c0_i32, %c0_i32_0 : i32, i32, i32, i32
  }
  func.func @transform_1(%arg0: i32, %arg1: i32) -> (i32, i32, i32, i32) {
    %c0_i32 = arith.constant 0 : i32
    %c0_i32_0 = arith.constant 0 : i32
    %c0_i32_1 = arith.constant 0 : i32
    return %arg0, %arg1, %c0_i32, %c0_i32_0 : i32, i32, i32, i32
  }
  func.func @transform_2(%arg0: i32, %arg1: i32) -> (i32, i32) {
    %c0_i32 = arith.constant 0 : i32
    %c0_i32_0 = arith.constant 0 : i32
    %c0_i32_1 = arith.constant 0 : i32
    return %c0_i32, %c0_i32_0 : i32, i32
  }
  func.func @transform_3(%arg0: i32, %arg1: i32) -> (i32, i32) {
    %c0_i32 = arith.constant 0 : i32
    %c0_i32_0 = arith.constant 0 : i32
    %c0_i32_1 = arith.constant 0 : i32
    return %c0_i32, %c0_i32_0 : i32, i32
  }
  func.func @transform_4(%arg0: i32, %arg1: i32) -> (i32, i32) {
    %c0_i32 = arith.constant 0 : i32
    %c0_i32_0 = arith.constant 0 : i32
    %c0_i32_1 = arith.constant 0 : i32
    return %c0_i32, %c0_i32_0 : i32, i32
  }
  func.func @transform_5(%arg0: i32, %arg1: i32) -> (i32, i32) {
    %c0_i32 = arith.constant 0 : i32
    %c0_i32_0 = arith.constant 0 : i32
    %c0_i32_1 = arith.constant 0 : i32
    return %c0_i32, %c0_i32_0 : i32, i32
  }
  func.func @transform_6(%arg0: i32, %arg1: i32) -> (i32, i32, i32, i32) {
    %c0_i32 = arith.constant 0 : i32
    %c0_i32_0 = arith.constant 0 : i32
    %c0_i32_1 = arith.constant 0 : i32
    return %arg0, %arg1, %c0_i32, %c0_i32_0 : i32, i32, i32, i32
  }
}

</mosaic_0001>

<llo_original>
// kernel: tpu_custom_call.1
$region0: #{tpu_custom_call.1}
  #allocation0 [shape = 'u32[]', space=smem, size = 0x4, offset = 0x4, fixed_abs, tag = 'smem constant byte address 0x4 - core index']
  #allocation1 [shape = 'u32[72,128]{1,0:T(1,128)}', space=vmem, size = 0x9000, scoped, tag = 'internal scratch']
  %s0 = inlined_call_operand.vmem [shape: bf16[2,8,8,36], index: 0, kind: input, shape index: {}]
  %s1 = inlined_call_operand.vmem [shape: f32[2,16,16,4], index: 1, kind: input, shape index: {}]
  %s2 = inlined_call_operand.vmem [shape: bf16[36,4], index: 2, kind: input, shape index: {}]
  %s3 = inlined_call_operand.vmem [shape: f32[1,4], index: 3, kind: input, shape index: {}]
  %s4 = inlined_call_operand.vmem [shape: bf16[4,4], index: 4, kind: input, shape index: {}]
  %s5 = inlined_call_operand.vmem [shape: f32[1,4], index: 5, kind: input, shape index: {}]
  %s6 = inlined_call_operand.vmem [shape: f32[2,16,16,4], index: 6, kind: output, shape index: {}]
  %s7 = sld [smem:[#allocation0]]
  $region57: #{tpu_custom_call.1} parent=0
    _
  %s9 = ssub.s32 1, %s7
  %s10 = scalar_select 0, %s9, %s7
  loop: start=0, step=1, limit=6
  $region2: #{tpu_custom_call.1} parent=0 // loop_pre_header
    _
  $region3: #{tpu_custom_call.1} parent=0 // loop_header
    %s12 = sphi 0, %s16
    %p13 = scmp.ge.s32.totalorder %s12, 6
    %s19 = sphi 0, %s31
    %s20 = sphi 0, %s27
    %s21 = sphi 0, %s19
    %s22 = sphi 0, %s20
    %s23 = sphi 0, %s21
    %s24 = sphi 0, %s22
    %s36 = sphi 0, %s38
    %s39 = sphi 0, %s36
    %s40 = sphi 0, %s39
    %s56 = sphi 0, %s40
    %s64 = sphi 0, %s66
    %s67 = sphi 0, %s64
    %s68 = sphi 0, %s67
    %s84 = sphi 0, %s68
    %s88 = sphi 0, %s88
    %s90 = sphi 0, %s88
    %s91 = sphi 0, %s90
    %s105 = sphi 0, %s91
    %s109 = sphi 0, %s109
    %s111 = sphi 0, %s109
    %s112 = sphi 0, %s111
    %s126 = sphi 0, %s112
    %s130 = sphi 0, %s130
    %s132 = sphi 0, %s130
    %s133 = sphi 0, %s132
    %s147 = sphi 0, %s133
    %s151 = sphi 0, %s151
    %s153 = sphi 0, %s151
    %s154 = sphi 0, %s153
    %s168 = sphi 0, %s154
    %s176 = sphi 0, %s178
    %s179 = sphi 0, %s176
    %s180 = sphi 0, %s179
    %s196 = sphi 0, %s180
  $region4: #{tpu_custom_call.1} parent=0 // loop_header_branch
    %15 = sbr.rel (%p13) target = $region8
  $region5: #{tpu_custom_call.1} parent=0 // loop_body
    %s17 = ssub.s32 %s12, 1
    %s18 = ssub.s32 %s12, 2
    %s25 = sadd.s32 1, %s20
    %p26 = scmp.ge.s32.totalorder %s25, 2
    %s27 = scalar_select %p26, 0, %s25
    %s28 = sadd.s32 1, %s19
    %s29 = scalar_select %p26, %s28, %s19
    %p30 = scmp.ge.s32.totalorder %s29, 2
    %s31 = scalar_select %p30, 0, %s29
    %s32 = ssub.s32 %s19, %s31
    %s33 = ssub.s32 %s20, %s27
    %s34 = sor.u32 %s32, %s33
    %p35 = scmp.eq.s32.totalorder %s34, 0
    %s37 = sadd.s32 %s36, 1
    %s38 = scalar_select %p35, %s36, %s37
    %p41 = pneg %p35
    %p42 = scmp.eq.s32.totalorder %s12, 3
    %p43 = por %p41, %p42
    %p44 = scmp.ne.s32.totalorder %s36, %s39
    %p45 = scmp.eq.s32.totalorder %s12, 0
    %p46 = por %p44, %p45
    %p47 = scmp.ne.s32.totalorder %s36, %s39
    %p48 = scmp.eq.s32.totalorder %s17, 3
    %p49 = por %p47, %p48
    %p50 = scmp.ne.s32.totalorder %s39, %s40
    %p51 = scmp.eq.s32.totalorder %s17, 0
    %p52 = por %p50, %p51
    %p53 = scmp.ne.s32.totalorder %s39, %s40
    %p54 = scmp.eq.s32.totalorder %s18, 3
    %p55 = por %p53, %p54
    %p57 = scmp.ne.s32.totalorder %s40, %s56
    %p58 = scmp.eq.s32.totalorder %s18, 0
    %p59 = por %p57, %p58
    %s60 = ssub.s32 %s19, %s31
    %s61 = ssub.s32 %s20, %s27
    %s62 = sor.u32 %s60, %s61
    %p63 = scmp.eq.s32.totalorder %s62, 0
    %s65 = sadd.s32 %s64, 1
    %s66 = scalar_select %p63, %s64, %s65
    %p69 = pneg %p63
    %p70 = scmp.eq.s32.totalorder %s12, 3
    %p71 = por %p69, %p70
    %p72 = scmp.ne.s32.totalorder %s64, %s67
    %p73 = scmp.eq.s32.totalorder %s12, 0
    %p74 = por %p72, %p73
    %p75 = scmp.ne.s32.totalorder %s64, %s67
    %p76 = scmp.eq.s32.totalorder %s17, 3
    %p77 = por %p75, %p76
    %p78 = scmp.ne.s32.totalorder %s67, %s68
    %p79 = scmp.eq.s32.totalorder %s17, 0
    %p80 = por %p78, %p79
    %p81 = scmp.ne.s32.totalorder %s67, %s68
    %p82 = scmp.eq.s32.totalorder %s18, 3
    %p83 = por %p81, %p82
    %p85 = scmp.ne.s32.totalorder %s68, %s84
    %p86 = scmp.eq.s32.totalorder %s18, 0
    %p87 = por %p85, %p86
    %s89 = sadd.s32 %s88, 1
    %p92 = scmp.eq.s32.totalorder %s12, 3
    %p93 = scmp.ne.s32.totalorder %s88, %s90
    %p94 = scmp.eq.s32.totalorder %s12, 0
    %p95 = por %p93, %p94
    %p96 = scmp.ne.s32.totalorder %s88, %s90
    %p97 = scmp.eq.s32.totalorder %s17, 3
    %p98 = por %p96, %p97
    %p99 = scmp.ne.s32.totalorder %s90, %s91
    %p100 = scmp.eq.s32.totalorder %s17, 0
    %p101 = por %p99, %p100
    %p102 = scmp.ne.s32.totalorder %s90, %s91
    %p103 = scmp.eq.s32.totalorder %s18, 3
    %p104 = por %p102, %p103
    %p106 = scmp.ne.s32.totalorder %s91, %s105
    %p107 = scmp.eq.s32.totalorder %s18, 0
    %p108 = por %p106, %p107
    %s110 = sadd.s32 %s109, 1
    %p113 = scmp.eq.s32.totalorder %s12, 3
    %p114 = scmp.ne.s32.totalorder %s109, %s111
    %p115 = scmp.eq.s32.totalorder %s12, 0
    %p116 = por %p114, %p115
    %p117 = scmp.ne.s32.totalorder %s109, %s111
    %p118 = scmp.eq.s32.totalorder %s17, 3
    %p119 = por %p117, %p118
    %p120 = scmp.ne.s32.totalorder %s111, %s112
    %p121 = scmp.eq.s32.totalorder %s17, 0
    %p122 = por %p120, %p121
    %p123 = scmp.ne.s32.totalorder %s111, %s112
    %p124 = scmp.eq.s32.totalorder %s18, 3
    %p125 = por %p123, %p124
    %p127 = scmp.ne.s32.totalorder %s112, %s126
    %p128 = scmp.eq.s32.totalorder %s18, 0
    %p129 = por %p127, %p128
    %s131 = sadd.s32 %s130, 1
    %p134 = scmp.eq.s32.totalorder %s12, 3
    %p135 = scmp.ne.s32.totalorder %s130, %s132
    %p136 = scmp.eq.s32.totalorder %s12, 0
    %p137 = por %p135, %p136
    %p138 = scmp.ne.s32.totalorder %s130, %s132
    %p139 = scmp.eq.s32.totalorder %s17, 3
    %p140 = por %p138, %p139
    %p141 = scmp.ne.s32.totalorder %s132, %s133
    %p142 = scmp.eq.s32.totalorder %s17, 0
    %p143 = por %p141, %p142
    %p144 = scmp.ne.s32.totalorder %s132, %s133
    %p145 = scmp.eq.s32.totalorder %s18, 3
    %p146 = por %p144, %p145
    %p148 = scmp.ne.s32.totalorder %s133, %s147
    %p149 = scmp.eq.s32.totalorder %s18, 0
    %p150 = por %p148, %p149
    %s152 = sadd.s32 %s151, 1
    %p155 = scmp.eq.s32.totalorder %s12, 3
    %p156 = scmp.ne.s32.totalorder %s151, %s153
    %p157 = scmp.eq.s32.totalorder %s12, 0
    %p158 = por %p156, %p157
    %p159 = scmp.ne.s32.totalorder %s151, %s153
    %p160 = scmp.eq.s32.totalorder %s17, 3
    %p161 = por %p159, %p160
    %p162 = scmp.ne.s32.totalorder %s153, %s154
    %p163 = scmp.eq.s32.totalorder %s17, 0
    %p164 = por %p162, %p163
    %p165 = scmp.ne.s32.totalorder %s153, %s154
    %p166 = scmp.eq.s32.totalorder %s18, 3
    %p167 = por %p165, %p166
    %p169 = scmp.ne.s32.totalorder %s154, %s168
    %p170 = scmp.eq.s32.totalorder %s18, 0
    %p171 = por %p169, %p170
    %s172 = ssub.s32 %s19, %s31
    %s173 = ssub.s32 %s20, %s27
    %s174 = sor.u32 %s172, %s173
    %p175 = scmp.eq.s32.totalorder %s174, 0
    %s177 = sadd.s32 %s176, 1
    %s178 = scalar_select %p175, %s176, %s177
    %p181 = pneg %p175
    %p182 = scmp.eq.s32.totalorder %s12, 3
    %p183 = por %p181, %p182
    %p184 = scmp.ne.s32.totalorder %s176, %s179
    %p185 = scmp.eq.s32.totalorder %s12, 0
    %p186 = por %p184, %p185
    %p187 = scmp.ne.s32.totalorder %s176, %s179
    %p188 = scmp.eq.s32.totalorder %s17, 3
    %p189 = por %p187, %p188
    %p190 = scmp.ne.s32.totalorder %s179, %s180
    %p191 = scmp.eq.s32.totalorder %s17, 0
    %p192 = por %p190, %p191
    %p193 = scmp.ne.s32.totalorder %s179, %s180
    %p194 = scmp.eq.s32.totalorder %s18, 3
    %p195 = por %p193, %p194
    %p197 = scmp.ne.s32.totalorder %s180, %s196
    %p198 = scmp.eq.s32.totalorder %s18, 0
    %p199 = por %p197, %p198
    %p200 = scmp.le.s32.totalorder 1, %s12
    %p201 = scmp.lt.s32.totalorder %s12, 5
    %p202 = pnand %p200, %p201
    %p203 = pneg %p202
    // Predicated region
    $region9: #{tpu_custom_call.1} parent=5 // pred_check
      _
    $region10: #{tpu_custom_call.1} parent=5 // pred_check_branch
      %205 = sbr.rel (%p202) target = $region12
    $region11: #{tpu_custom_call.1} parent=5 // pred_region
      %s206 = ssub.s32 %s12, 1
      // Predicated region
      $region13: #{tpu_custom_call.1} parent=11 // pred_check
        %p207 = pneg %p101
      $region14: #{tpu_custom_call.1} parent=11 // pred_check_branch
        %209 = sbr.rel (%p207) target = $region16
      $region15: #{tpu_custom_call.1} parent=11 // pred_region
        _
      $region16: #{tpu_custom_call.1} parent=11 // pred_fallthru
        _
      // Predicated region
      $region17: #{tpu_custom_call.1} parent=11 // pred_check
        %p210 = pneg %p122
      $region18: #{tpu_custom_call.1} parent=11 // pred_check_branch
        %212 = sbr.rel (%p210) target = $region20
      $region19: #{tpu_custom_call.1} parent=11 // pred_region
        _
      $region20: #{tpu_custom_call.1} parent=11 // pred_fallthru
        _
      // Predicated region
      $region21: #{tpu_custom_call.1} parent=11 // pred_check
        %p213 = pneg %p143
      $region22: #{tpu_custom_call.1} parent=11 // pred_check_branch
        %215 = sbr.rel (%p213) target = $region24
      $region23: #{tpu_custom_call.1} parent=11 // pred_region
        _
      $region24: #{tpu_custom_call.1} parent=11 // pred_fallthru
        _
      // Predicated region
      $region25: #{tpu_custom_call.1} parent=11 // pred_check
        %p216 = pneg %p164
      $region26: #{tpu_custom_call.1} parent=11 // pred_check_branch
        %218 = sbr.rel (%p216) target = $region28
      $region27: #{tpu_custom_call.1} parent=11 // pred_region
        _
      $region28: #{tpu_custom_call.1} parent=11 // pred_fallthru
        _
    $region12: #{tpu_custom_call.1} parent=5 // pred_fallthru
      _
    %p219 = scmp.lt.s32.totalorder %s12, 4
    // Predicated region
    $region29: #{tpu_custom_call.1} parent=5 // pred_check
      %p220 = pneg %p219
    $region30: #{tpu_custom_call.1} parent=5 // pred_check_branch
      %222 = sbr.rel (%p220) target = $region32
    $region31: #{tpu_custom_call.1} parent=5 // pred_region
      // Predicated region
      $region33: #{tpu_custom_call.1} parent=31 // pred_check
        %p223 = pneg %p46
      $region34: #{tpu_custom_call.1} parent=31 // pred_check_branch
        %225 = sbr.rel (%p223) target = $region36
      $region35: #{tpu_custom_call.1} parent=31 // pred_region
        %s226 = smul.u32 4, %s20
        %p227 = scmp.lt.s32.totalorder %s19, 1
        %s228 = scalar_select %p227, %s19, 1
        %p229 = scmp.lt.s32.totalorder %s226, 7
        %s230 = scalar_select %p229, %s226, 7
        %s231 = smul.addr %s228, 8
        %s232 = sadd.s32 %s230, %s231
        %s233 = smul.addr %s232, 4
        %s234 = scalar_lea.vmem %s0, %s233
        %s235 = smul.u32 4, %s20
      $region36: #{tpu_custom_call.1} parent=31 // pred_fallthru
        _
      // Predicated region
      $region37: #{tpu_custom_call.1} parent=31 // pred_check
        %p236 = pneg %p74
      $region38: #{tpu_custom_call.1} parent=31 // pred_check_branch
        %238 = sbr.rel (%p236) target = $region40
      $region39: #{tpu_custom_call.1} parent=31 // pred_region
        %s239 = smul.u32 8, %s20
        %p240 = scmp.lt.s32.totalorder %s19, 1
        %s241 = scalar_select %p240, %s19, 1
        %p242 = scmp.lt.s32.totalorder %s239, 15
        %s243 = scalar_select %p242, %s239, 15
        %s244 = smul.addr %s243, 2
        %s245 = smul.addr %s241, 32
        %s246 = sadd.s32 %s244, %s245
        %s247 = smul.addr %s246, 8
        %s248 = scalar_lea.vmem %s1, %s247
        %s249 = smul.u32 8, %s20
      $region40: #{tpu_custom_call.1} parent=31 // pred_fallthru
        _
    $region32: #{tpu_custom_call.1} parent=5 // pred_fallthru
      _
    %p250 = scmp.le.s32.totalorder 1, %s12
    %p251 = scmp.lt.s32.totalorder %s12, 5
    %p252 = pnand %p250, %p251
    %p253 = pneg %p252
    // Predicated region
    $region41: #{tpu_custom_call.1} parent=5 // pred_check
      _
    $region42: #{tpu_custom_call.1} parent=5 // pred_check_branch
      %255 = sbr.rel (%p252) target = $region44
    $region43: #{tpu_custom_call.1} parent=5 // pred_region
      %s256 = ssub.s32 %s12, 1
      %s257 = smul.u32 4, %s22
      %p258 = scmp.lt.s32.totalorder %s21, 1
      %s259 = scalar_select %p258, %s21, 1
      %p260 = scmp.lt.s32.totalorder %s257, 7
      %s261 = scalar_select %p260, %s257, 7
      %s262 = smul.addr %s259, 8
      %s263 = sadd.s32 %s261, %s262
      %s264 = smul.addr %s263, 4
      %s265 = scalar_lea.vmem %s0, %s264
      %p266 = pneg %p52
      %p267 = pneg %p49
      %s268 = smul.u32 8, %s22
      %p269 = scmp.lt.s32.totalorder %s21, 1
      %s270 = scalar_select %p269, %s21, 1
      %p271 = scmp.lt.s32.totalorder %s268, 15
      %s272 = scalar_select %p271, %s268, 15
      %s273 = smul.addr %s272, 2
      %s274 = smul.addr %s270, 32
      %s275 = sadd.s32 %s273, %s274
      %s276 = smul.addr %s275, 8
      %s277 = scalar_lea.vmem %s1, %s276
      %p278 = pneg %p80
      %p279 = pneg %p77
      %p280 = pneg %p101
      %p281 = pneg %p98
      %p282 = pneg %p122
      %p283 = pneg %p119
      %p284 = pneg %p143
      %p285 = pneg %p140
      %p286 = pneg %p164
      %p287 = pneg %p161
      %p288 = pneg %p192
      %p289 = pneg %p189
      %s290 = smul.u32 8, %s22
      %p291 = scmp.lt.s32.totalorder %s21, 1
      %s292 = scalar_select %p291, %s21, 1
      %p293 = scmp.lt.s32.totalorder %s290, 15
      %s294 = scalar_select %p293, %s290, 15
      %s295 = smul.addr %s294, 2
      %s296 = smul.addr %s292, 32
      %s297 = sadd.s32 %s295, %s296
      %s298 = smul.addr %s297, 8
      %s299 = scalar_lea.vmem %s6, %s298
      %s300 = smul.u32 4, %s22
      %p301 = scmp.lt.s32.totalorder %s21, 1
      %s302 = scalar_select %p301, %s21, 1
      %p303 = scmp.lt.s32.totalorder %s300, 7
      %s304 = scalar_select %p303, %s300, 7
      %s305 = smul.addr %s302, 8
      %s306 = sadd.s32 %s304, %s305
      %s307 = smul.addr %s306, 4
      %s308 = scalar_lea.vmem %s0, %s307
      %s309 = smul.u32 4, %s22
      %s310 = smul.u32 8, %s22
      %p311 = scmp.lt.s32.totalorder %s21, 1
      %s312 = scalar_select %p311, %s21, 1
      %p313 = scmp.lt.s32.totalorder %s310, 15
      %s314 = scalar_select %p313, %s310, 15
      %s315 = smul.addr %s314, 2
      %s316 = smul.addr %s312, 32
      %s317 = sadd.s32 %s315, %s316
      %s318 = smul.addr %s317, 8
      %s319 = scalar_lea.vmem %s1, %s318
      %s320 = smul.u32 8, %s22
      %s321 = smul.u32 8, %s22
      %p322 = scmp.lt.s32.totalorder %s21, 1
      %s323 = scalar_select %p322, %s21, 1
      %p324 = scmp.lt.s32.totalorder %s321, 15
      %s325 = scalar_select %p324, %s321, 15
      %s326 = smul.addr %s325, 2
      %s327 = smul.addr %s323, 32
      %s328 = sadd.s32 %s326, %s327
      %s329 = smul.addr %s328, 8
      %s330 = scalar_lea.vmem %s6, %s329
      %s331 = smul.u32 8, %s22
      %v333 = vld [vmem:[%s308] sm:$0xf]
      %v334 = vld [vmem:[%s308 + $0x4] sm:$0xf]
      %v335 = vld [vmem:[%s308 + $0x8] sm:$0xf]
      %v336 = vld [vmem:[%s308 + $0xc] sm:$0xf]
      %v337 = vld [vmem:[%s2] sm:$0xf]
      %v338 = vld [vmem:[%s2 + $0x4] sm:$0xf]
      %v339 = vld [vmem:[%s2 + $0x8] sm:$0xf]
      %v340 = vld [vmem:[%s2 + $0xc] sm:$0xf]
      %v341 = vld [vmem:[%s2 + $0x10] sm:$0x3]
      %v342 = vld [vmem:[%s3] sm:$0x1]
      %v344 = vperm.slane %v342, 0
      %v350 = vunpack.c.l.b16 %v333
      %v351 = vunpack.c.l.b16 %v334
      %v352 = vunpack.c.l.b16 %v335
      %v353 = vunpack.c.l.b16 %v336
      %v354 = vpack.c.b16 %v351, %v350
      %v355 = vpack.c.b16 %v353, %v352
      %v361 = vunpack.c.l.b16 %v337
      %v362 = vunpack.c.l.b16 %v338
      %v363 = vunpack.c.l.b16 %v339
      %v364 = vunpack.c.l.b16 %v340
      %v365 = vunpack.c.l.b16 %v341
      %v366 = vpack.c.b16 %v362, %v361
      %v367 = vpack.c.b16 %v364, %v363
      %v368 = vpack.c.b16 %v365, %v365
      %vm371 = vcmask 293888
      %v373 = vsel %vm371, %v354, 0
      %v376 = vsel %vm371, %v355, 0
      %vm378 = vcmask 1041408
      %v380 = vsel %vm378, %v368, 0
      %382 = vmatpush.bf16.msra.mxu0 0
      %383 = vmatpush.bf16.msra.mxu0 0
      %384 = vmatpush.bf16.msra.mxu0 0
      %385 = vmatpush.bf16.msra.mxu0 0
      %386 = vmatpush.bf16.msra.mxu0 0
      %387 = vmatpush.bf16.msra.mxu0 %v380
      %388 = vmatpush.bf16.msra.mxu0 %v367
      %389 = vmatpush.bf16.msra.mxu0 %v366
      %390 = vmatmul.bf16.gmra.mxu0 %v373
      %v391 = vpop.f32.mrf.mxu0
      %v392 = vadd.f32 %v344, %v391
      %v393 = vpop.f32.mrf.mxu0
      %v394 = vadd.f32 %v344, %v393
      %395 = vmatmul.bf16.gmra.mxu0 %v376
      %v396 = vpop.f32.mrf.mxu0
      %v397 = vadd.f32 %v344, %v396
      %v398 = vpop.f32.mrf.mxu0
      %v399 = vadd.f32 %v344, %v398
      %400 = vdwg.mxu0
      %v401 = vmax.f32 %v392, 0.0
      %v402 = vmax.f32 %v394, 0.0
      %v403 = vmax.f32 %v397, 0.0
      %v404 = vmax.f32 %v399, 0.0
      %v409 = vrot.slane %v401, 1
      %v410 = vrot.slane %v401, 2
      %v411 = vrot.slane %v401, 3
      %v412 = vrot.slane %v401, 4
      %v413 = vrot.slane %v401, 5
      %v414 = vrot.slane %v401, 6
      %v415 = vrot.slane %v401, 7
      %v416 = vrot.slane %v402, 1
      %v417 = vrot.slane %v402, 2
      %v418 = vrot.slane %v402, 3
      %v419 = vrot.slane %v402, 4
      %v420 = vrot.slane %v402, 5
      %v421 = vrot.slane %v402, 6
      %v422 = vrot.slane %v402, 7
      %v423 = vrot.slane %v403, 1
      %v424 = vrot.slane %v403, 2
      %v425 = vrot.slane %v403, 3
      %v426 = vrot.slane %v403, 4
      %v427 = vrot.slane %v403, 5
      %v428 = vrot.slane %v403, 6
      %v429 = vrot.slane %v403, 7
      %v430 = vrot.slane %v404, 1
      %v431 = vrot.slane %v404, 2
      %v432 = vrot.slane %v404, 3
      %v433 = vrot.slane %v404, 4
      %v434 = vrot.slane %v404, 5
      %v435 = vrot.slane %v404, 6
      %v436 = vrot.slane %v404, 7
      %v437 = vperm.slane %v401, 0
      %v438 = vperm.slane %v409, 0
      %v439 = vperm.slane %v410, 0
      %v440 = vperm.slane %v411, 0
      %v441 = vperm.slane %v412, 0
      %v442 = vperm.slane %v413, 0
      %v443 = vperm.slane %v414, 0
      %v444 = vperm.slane %v415, 0
      %v445 = vperm.slane %v402, 0
      %v446 = vperm.slane %v416, 0
      %v447 = vperm.slane %v417, 0
      %v448 = vperm.slane %v418, 0
      %v449 = vperm.slane %v419, 0
      %v450 = vperm.slane %v420, 0
      %v451 = vperm.slane %v421, 0
      %v452 = vperm.slane %v422, 0
      %v453 = vperm.slane %v403, 0
      %v454 = vperm.slane %v423, 0
      %v455 = vperm.slane %v424, 0
      %v456 = vperm.slane %v425, 0
      %v457 = vperm.slane %v426, 0
      %v458 = vperm.slane %v427, 0
      %v459 = vperm.slane %v428, 0
      %v460 = vperm.slane %v429, 0
      %v461 = vperm.slane %v404, 0
      %v462 = vperm.slane %v430, 0
      %v463 = vperm.slane %v431, 0
      %v464 = vperm.slane %v432, 0
      %v465 = vperm.slane %v433, 0
      %v466 = vperm.slane %v434, 0
      %v467 = vperm.slane %v435, 0
      %v468 = vperm.slane %v436, 0
      %v469 = vld [vmem:[%s319] sm:$0xff]
      %v470 = vld [vmem:[%s319 + $0x8] sm:$0xff]
      %v471 = vld [vmem:[%s319 + $0x10] sm:$0xff]
      %v472 = vld [vmem:[%s319 + $0x18] sm:$0xff]
      %v473 = vld [vmem:[%s319 + $0x20] sm:$0xff]
      %v474 = vld [vmem:[%s319 + $0x28] sm:$0xff]
      %v475 = vld [vmem:[%s319 + $0x30] sm:$0xff]
      %v476 = vld [vmem:[%s319 + $0x38] sm:$0xff]
      %v477 = vld [vmem:[%s319 + $0x40] sm:$0xff]
      %v478 = vld [vmem:[%s319 + $0x48] sm:$0xff]
      %v479 = vld [vmem:[%s319 + $0x50] sm:$0xff]
      %v480 = vld [vmem:[%s319 + $0x58] sm:$0xff]
      %v481 = vld [vmem:[%s319 + $0x60] sm:$0xff]
      %v482 = vld [vmem:[%s319 + $0x68] sm:$0xff]
      %v483 = vld [vmem:[%s319 + $0x70] sm:$0xff]
      %v484 = vld [vmem:[%s319 + $0x78] sm:$0xff]
      %v485 = vpack.c.bf16 %v470, %v469
      %v486 = vpack.c.bf16 %v472, %v471
      %v487 = vpack.c.bf16 %v474, %v473
      %v488 = vpack.c.bf16 %v476, %v475
      %v489 = vpack.c.bf16 %v478, %v477
      %v490 = vpack.c.bf16 %v480, %v479
      %v491 = vpack.c.bf16 %v482, %v481
      %v492 = vpack.c.bf16 %v484, %v483
      %v493 = vld [vmem:[%s4] sm:$0x3]
      %v494 = vld [vmem:[%s5] sm:$0x1]
      %v496 = vperm.slane %v494, 0
      %vm498 = vcmask 31744
      %v500 = vsel %vm498, %v485, 0
      %v503 = vsel %vm498, %v486, 0
      %v506 = vsel %vm498, %v487, 0
      %v509 = vsel %vm498, %v488, 0
      %v512 = vsel %vm498, %v489, 0
      %v515 = vsel %vm498, %v490, 0
      %v518 = vsel %vm498, %v491, 0
      %v521 = vsel %vm498, %v492, 0
      %v524 = vsel %vm378, %v493, 0
      %526 = vmatpush.bf16.msra.mxu0 0
      %527 = vmatpush.bf16.msra.mxu0 0
      %528 = vmatpush.bf16.msra.mxu0 0
      %529 = vmatpush.bf16.msra.mxu0 0
      %530 = vmatpush.bf16.msra.mxu0 0
      %531 = vmatpush.bf16.msra.mxu0 0
      %532 = vmatpush.bf16.msra.mxu0 0
      %533 = vmatpush.bf16.msra.mxu0 %v524
      %534 = vmatmul.bf16.gmra.mxu0 %v500
      %v535 = vpop.f32.mrf.mxu0
      %v536 = vadd.f32 %v496, %v535
      %v537 = vpop.f32.mrf.mxu0
      %v538 = vadd.f32 %v496, %v537
      %539 = vmatmul.bf16.gmra.mxu0 %v503
      %v540 = vpop.f32.mrf.mxu0
      %v541 = vadd.f32 %v496, %v540
      %v542 = vpop.f32.mrf.mxu0
      %v543 = vadd.f32 %v496, %v542
      %544 = vmatmul.bf16.gmra.mxu0 %v506
      %v545 = vpop.f32.mrf.mxu0
      %v546 = vadd.f32 %v496, %v545
      %v547 = vpop.f32.mrf.mxu0
      %v548 = vadd.f32 %v496, %v547
      %549 = vmatmul.bf16.gmra.mxu0 %v509
      %v550 = vpop.f32.mrf.mxu0
      %v551 = vadd.f32 %v496, %v550
      %v552 = vpop.f32.mrf.mxu0
      %v553 = vadd.f32 %v496, %v552
      %554 = vmatmul.bf16.gmra.mxu0 %v512
      %v555 = vpop.f32.mrf.mxu0
      %v556 = vadd.f32 %v496, %v555
      %v557 = vpop.f32.mrf.mxu0
      %v558 = vadd.f32 %v496, %v557
      %559 = vmatmul.bf16.gmra.mxu0 %v515
      %v560 = vpop.f32.mrf.mxu0
      %v561 = vadd.f32 %v496, %v560
      %v562 = vpop.f32.mrf.mxu0
      %v563 = vadd.f32 %v496, %v562
      %564 = vmatmul.bf16.gmra.mxu0 %v518
      %v565 = vpop.f32.mrf.mxu0
      %v566 = vadd.f32 %v496, %v565
      %v567 = vpop.f32.mrf.mxu0
      %v568 = vadd.f32 %v496, %v567
      %569 = vmatmul.bf16.gmra.mxu0 %v521
      %v570 = vpop.f32.mrf.mxu0
      %v571 = vadd.f32 %v496, %v570
      %v572 = vpop.f32.mrf.mxu0
      %v573 = vadd.f32 %v496, %v572
      %574 = vdwg.mxu0
      %v575 = vmax.f32 %v536, 0.0
      %v576 = vmax.f32 %v538, 0.0
      %v577 = vmax.f32 %v541, 0.0
      %v578 = vmax.f32 %v543, 0.0
      %v579 = vmax.f32 %v546, 0.0
      %v580 = vmax.f32 %v548, 0.0
      %v581 = vmax.f32 %v551, 0.0
      %v582 = vmax.f32 %v553, 0.0
      %v583 = vmax.f32 %v556, 0.0
      %v584 = vmax.f32 %v558, 0.0
      %v585 = vmax.f32 %v561, 0.0
      %v586 = vmax.f32 %v563, 0.0
      %v587 = vmax.f32 %v566, 0.0
      %v588 = vmax.f32 %v568, 0.0
      %v589 = vmax.f32 %v571, 0.0
      %v590 = vmax.f32 %v573, 0.0
      %591 = vst [vmem:[#allocation1] ss:$4 sm:$0xff] %v437
      %s592 = scalar_lea.vmem [#allocation1], 1
      %593 = vst [vmem:[%s592] ss:$4 sm:$0xff] %v438
      %s594 = scalar_lea.vmem [#allocation1], 2
      %595 = vst [vmem:[%s594] ss:$4 sm:$0xff] %v439
      %s596 = scalar_lea.vmem [#allocation1], 3
      %597 = vst [vmem:[%s596] ss:$4 sm:$0xff] %v440
      %s598 = scalar_lea.vmem [#allocation1], 32
      %599 = vst [vmem:[%s598] ss:$4 sm:$0xff] %v441
      %s600 = scalar_lea.vmem [#allocation1], 33
      %601 = vst [vmem:[%s600] ss:$4 sm:$0xff] %v442
      %s602 = scalar_lea.vmem [#allocation1], 34
      %603 = vst [vmem:[%s602] ss:$4 sm:$0xff] %v443
      %s604 = scalar_lea.vmem [#allocation1], 35
      %605 = vst [vmem:[%s604] ss:$4 sm:$0xff] %v444
      %v606 = vld.sshfl [vmem:[#allocation1] sm:$0xff pattern:$0x73625140]
      %v607 = vld.sshfl [vmem:[#allocation1 + $0x20] sm:$0xff pattern:$0x73625140]
      %608 = vst [vmem:[#allocation1] ss:$4 sm:$0xff] %v437
      %609 = vst [vmem:[%s592] ss:$4 sm:$0xff] %v438
      %610 = vst [vmem:[%s594] ss:$4 sm:$0xff] %v439
      %611 = vst [vmem:[%s596] ss:$4 sm:$0xff] %v440
      %612 = vst [vmem:[%s598] ss:$4 sm:$0xff] %v441
      %613 = vst [vmem:[%s600] ss:$4 sm:$0xff] %v442
      %614 = vst [vmem:[%s602] ss:$4 sm:$0xff] %v443
      %615 = vst [vmem:[%s604] ss:$4 sm:$0xff] %v444
      %v616 = vld.sshfl [vmem:[#allocation1] sm:$0xff pattern:$0x73625140]
      %v617 = vld.sshfl [vmem:[#allocation1 + $0x20] sm:$0xff pattern:$0x73625140]
      %618 = vst [vmem:[#allocation1] ss:$4 sm:$0xff] %v445
      %619 = vst [vmem:[%s592] ss:$4 sm:$0xff] %v446
      %620 = vst [vmem:[%s594] ss:$4 sm:$0xff] %v447
      %621 = vst [vmem:[%s596] ss:$4 sm:$0xff] %v448
      %622 = vst [vmem:[%s598] ss:$4 sm:$0xff] %v449
      %623 = vst [vmem:[%s600] ss:$4 sm:$0xff] %v450
      %624 = vst [vmem:[%s602] ss:$4 sm:$0xff] %v451
      %625 = vst [vmem:[%s604] ss:$4 sm:$0xff] %v452
      %v626 = vld.sshfl [vmem:[#allocation1] sm:$0xff pattern:$0x73625140]
      %v627 = vld.sshfl [vmem:[#allocation1 + $0x20] sm:$0xff pattern:$0x73625140]
      %628 = vst [vmem:[#allocation1] ss:$4 sm:$0xff] %v445
      %629 = vst [vmem:[%s592] ss:$4 sm:$0xff] %v446
      %630 = vst [vmem:[%s594] ss:$4 sm:$0xff] %v447
      %631 = vst [vmem:[%s596] ss:$4 sm:$0xff] %v448
      %632 = vst [vmem:[%s598] ss:$4 sm:$0xff] %v449
      %633 = vst [vmem:[%s600] ss:$4 sm:$0xff] %v450
      %634 = vst [vmem:[%s602] ss:$4 sm:$0xff] %v451
      %635 = vst [vmem:[%s604] ss:$4 sm:$0xff] %v452
      %v636 = vld.sshfl [vmem:[#allocation1] sm:$0xff pattern:$0x73625140]
      %v637 = vld.sshfl [vmem:[#allocation1 + $0x20] sm:$0xff pattern:$0x73625140]
      %638 = vst [vmem:[#allocation1] ss:$4 sm:$0xff] %v453
      %639 = vst [vmem:[%s592] ss:$4 sm:$0xff] %v454
      %640 = vst [vmem:[%s594] ss:$4 sm:$0xff] %v455
      %641 = vst [vmem:[%s596] ss:$4 sm:$0xff] %v456
      %642 = vst [vmem:[%s598] ss:$4 sm:$0xff] %v457
      %643 = vst [vmem:[%s600] ss:$4 sm:$0xff] %v458
      %644 = vst [vmem:[%s602] ss:$4 sm:$0xff] %v459
      %645 = vst [vmem:[%s604] ss:$4 sm:$0xff] %v460
      %v646 = vld.sshfl [vmem:[#allocation1] sm:$0xff pattern:$0x73625140]
      %v647 = vld.sshfl [vmem:[#allocation1 + $0x20] sm:$0xff pattern:$0x73625140]
      %648 = vst [vmem:[#allocation1] ss:$4 sm:$0xff] %v453
      %649 = vst [vmem:[%s592] ss:$4 sm:$0xff] %v454
      %650 = vst [vmem:[%s594] ss:$4 sm:$0xff] %v455
      %651 = vst [vmem:[%s596] ss:$4 sm:$0xff] %v456
      %652 = vst [vmem:[%s598] ss:$4 sm:$0xff] %v457
      %653 = vst [vmem:[%s600] ss:$4 sm:$0xff] %v458
      %654 = vst [vmem:[%s602] ss:$4 sm:$0xff] %v459
      %655 = vst [vmem:[%s604] ss:$4 sm:$0xff] %v460
      %v656 = vld.sshfl [vmem:[#allocation1] sm:$0xff pattern:$0x73625140]
      %v657 = vld.sshfl [vmem:[#allocation1 + $0x20] sm:$0xff pattern:$0x73625140]
      %658 = vst [vmem:[#allocation1] ss:$4 sm:$0xff] %v461
      %659 = vst [vmem:[%s592] ss:$4 sm:$0xff] %v462
      %660 = vst [vmem:[%s594] ss:$4 sm:$0xff] %v463
      %661 = vst [vmem:[%s596] ss:$4 sm:$0xff] %v464
      %662 = vst [vmem:[%s598] ss:$4 sm:$0xff] %v465
      %663 = vst [vmem:[%s600] ss:$4 sm:$0xff] %v466
      %664 = vst [vmem:[%s602] ss:$4 sm:$0xff] %v467
      %665 = vst [vmem:[%s604] ss:$4 sm:$0xff] %v468
      %v666 = vld.sshfl [vmem:[#allocation1] sm:$0xff pattern:$0x73625140]
      %v667 = vld.sshfl [vmem:[#allocation1 + $0x20] sm:$0xff pattern:$0x73625140]
      %668 = vst [vmem:[#allocation1] ss:$4 sm:$0xff] %v461
      %669 = vst [vmem:[%s592] ss:$4 sm:$0xff] %v462
      %670 = vst [vmem:[%s594] ss:$4 sm:$0xff] %v463
      %671 = vst [vmem:[%s596] ss:$4 sm:$0xff] %v464
      %672 = vst [vmem:[%s598] ss:$4 sm:$0xff] %v465
      %673 = vst [vmem:[%s600] ss:$4 sm:$0xff] %v466
      %674 = vst [vmem:[%s602] ss:$4 sm:$0xff] %v467
      %675 = vst [vmem:[%s604] ss:$4 sm:$0xff] %v468
      %v676 = vld.sshfl [vmem:[#allocation1] sm:$0xff pattern:$0x73625140]
      %v677 = vld.sshfl [vmem:[#allocation1 + $0x20] sm:$0xff pattern:$0x73625140]
      %v694 = vadd.f32 %v575, %v606
      %v695 = vadd.f32 %v576, %v607
      %v696 = vadd.f32 %v577, %v616
      %v697 = vadd.f32 %v578, %v617
      %v698 = vadd.f32 %v579, %v626
      %v699 = vadd.f32 %v580, %v627
      %v700 = vadd.f32 %v581, %v636
      %v701 = vadd.f32 %v582, %v637
      %v702 = vadd.f32 %v583, %v646
      %v703 = vadd.f32 %v584, %v647
      %v704 = vadd.f32 %v585, %v656
      %v705 = vadd.f32 %v586, %v657
      %v706 = vadd.f32 %v587, %v666
      %v707 = vadd.f32 %v588, %v667
      %v708 = vadd.f32 %v589, %v676
      %v709 = vadd.f32 %v590, %v677
      %v710 = vadd.f32 %v694, %v469
      %v711 = vadd.f32 %v695, %v470
      %v712 = vadd.f32 %v696, %v471
      %v713 = vadd.f32 %v697, %v472
      %v714 = vadd.f32 %v698, %v473
      %v715 = vadd.f32 %v699, %v474
      %v716 = vadd.f32 %v700, %v475
      %v717 = vadd.f32 %v701, %v476
      %v718 = vadd.f32 %v702, %v477
      %v719 = vadd.f32 %v703, %v478
      %v720 = vadd.f32 %v704, %v479
      %v721 = vadd.f32 %v705, %v480
      %v722 = vadd.f32 %v706, %v481
      %v723 = vadd.f32 %v707, %v482
      %v724 = vadd.f32 %v708, %v483
      %v725 = vadd.f32 %v709, %v484
      %726 = vst.msk [vmem:[%s330] sm:$0xff] %vm498, %v710
      %727 = vst.msk [vmem:[%s330 + $0x8] sm:$0xff] %vm498, %v711
      %728 = vst.msk [vmem:[%s330 + $0x10] sm:$0xff] %vm498, %v712
      %729 = vst.msk [vmem:[%s330 + $0x18] sm:$0xff] %vm498, %v713
      %730 = vst.msk [vmem:[%s330 + $0x20] sm:$0xff] %vm498, %v714
      %731 = vst.msk [vmem:[%s330 + $0x28] sm:$0xff] %vm498, %v715
      %732 = vst.msk [vmem:[%s330 + $0x30] sm:$0xff] %vm498, %v716
      %733 = vst.msk [vmem:[%s330 + $0x38] sm:$0xff] %vm498, %v717
      %734 = vst.msk [vmem:[%s330 + $0x40] sm:$0xff] %vm498, %v718
      %735 = vst.msk [vmem:[%s330 + $0x48] sm:$0xff] %vm498, %v719
      %736 = vst.msk [vmem:[%s330 + $0x50] sm:$0xff] %vm498, %v720
      %737 = vst.msk [vmem:[%s330 + $0x58] sm:$0xff] %vm498, %v721
      %738 = vst.msk [vmem:[%s330 + $0x60] sm:$0xff] %vm498, %v722
      %739 = vst.msk [vmem:[%s330 + $0x68] sm:$0xff] %vm498, %v723
      %740 = vst.msk [vmem:[%s330 + $0x70] sm:$0xff] %vm498, %v724
      %741 = vst.msk [vmem:[%s330 + $0x78] sm:$0xff] %vm498, %v725
      %s742 = smul.u32 8, %s22
      %p743 = scmp.lt.s32.totalorder %s21, 1
      %s744 = scalar_select %p743, %s21, 1
      %p745 = scmp.lt.s32.totalorder %s742, 15
      %s746 = scalar_select %p745, %s742, 15
      %s747 = smul.addr %s746, 2
      %s748 = smul.addr %s744, 32
      %s749 = sadd.s32 %s747, %s748
      %s750 = smul.addr %s749, 8
      %s751 = scalar_lea.vmem %s6, %s750
      // Predicated region
      $region45: #{tpu_custom_call.1} parent=43 // pred_check
        %p752 = pneg %p189
      $region46: #{tpu_custom_call.1} parent=43 // pred_check_branch
        %754 = sbr.rel (%p752) target = $region48
      $region47: #{tpu_custom_call.1} parent=43 // pred_region
        %s755 = smul.u32 8, %s22
      $region48: #{tpu_custom_call.1} parent=43 // pred_fallthru
        _
    $region44: #{tpu_custom_call.1} parent=5 // pred_fallthru
      _
    %p756 = scmp.le.s32.totalorder 2, %s12
    // Predicated region
    $region49: #{tpu_custom_call.1} parent=5 // pred_check
      %p757 = pneg %p756
    $region50: #{tpu_custom_call.1} parent=5 // pred_check_branch
      %759 = sbr.rel (%p757) target = $region52
    $region51: #{tpu_custom_call.1} parent=5 // pred_region
      %s760 = ssub.s32 %s12, 2
      // Predicated region
      $region53: #{tpu_custom_call.1} parent=51 // pred_check
        %p761 = pneg %p195
      $region54: #{tpu_custom_call.1} parent=51 // pred_check_branch
        %763 = sbr.rel (%p761) target = $region56
      $region55: #{tpu_custom_call.1} parent=51 // pred_region
        %s764 = smul.u32 8, %s24
        %p765 = scmp.lt.s32.totalorder %s23, 1
        %s766 = scalar_select %p765, %s23, 1
        %p767 = scmp.lt.s32.totalorder %s764, 15
        %s768 = scalar_select %p767, %s764, 15
        %s769 = smul.addr %s768, 2
        %s770 = smul.addr %s766, 32
        %s771 = sadd.s32 %s769, %s770
        %s772 = smul.addr %s771, 8
        %s773 = scalar_lea.vmem %s6, %s772
      $region56: #{tpu_custom_call.1} parent=51 // pred_fallthru
        _
    $region52: #{tpu_custom_call.1} parent=5 // pred_fallthru
      _
  $region6: #{tpu_custom_call.1} parent=0 // loop_footer
    %s16 = sadd.s32 1, %s12
  $region7: #{tpu_custom_call.1} parent=0 // loop_footer_branch
    %11 = sbr.rel target = $region3
  $region8: #{tpu_custom_call.1} parent=0 // loop_exit
    _

</llo_original>
